<compile_context>
chip_gen: v7x
topology: tpu7x:2x2x1
jax: 0.10.0
libtpu: 0.0.40
codegen_flags: <defaults>
</compile_context>

<pallas_src>
import functools

import jax
import jax.numpy as jnp
from jax import lax
from jax.experimental import pallas as pl
from jax.experimental.pallas import tpu as pltpu

_LANES = 128


def _round_up(x, m):
    return (x + m - 1) // m * m


def _cdiv(a, b):
    return (a + b - 1) // b


def _vmem_capacity_bytes():
    """Physical per-core VMEM; falls back to the smallest generation (v7x, 64 MiB)."""
    try:
        cap = getattr(pltpu.get_tpu_info(), "vmem_capacity_bytes", None)
        if cap:
            return int(cap)
    except Exception:
        pass
    return 64 * 1024 * 1024


def _gap_single_kernel(x_ref, o_ref, *, inv_count):
    """Whole spatial extent in one block: one cross-lane reduce per output row."""
    total = jnp.sum(x_ref[...], axis=-1, dtype=jnp.float32)
    o_ref[...] = (total * inv_count).astype(o_ref.dtype)


def _gap_stream_kernel(x_ref, o_ref, acc_ref, *, s_total, s_tile, inv_count, mask):
    """Streaming spatial reduce with a lane-shaped f32 accumulator.

    Per chunk, 128-lane column groups of the block are added into a
    (n_tile, c_tile, 128) f32 accumulator (lane-aligned slices => pure VALU,
    no per-chunk XLU reduce / relayout).  The cross-lane reduce, 1/S scale and
    the cast to the output dtype happen only on the last reduction step.
    Correctness relies on the reduction axis k being the innermost grid axis
    (accumulator re-initialised at k == 0).
    """
    k = pl.program_id(2)

    @pl.when(k == 0)
    def _init():
        acc_ref[...] = jnp.zeros_like(acc_ref)

    n_groups = s_tile // _LANES
    if mask:
        lane = lax.broadcasted_iota(jnp.int32, (1, 1, _LANES), 2)
        base = k * s_tile

    def _add_group(q, carry):
        off = pl.multiple_of(q * _LANES, _LANES)
        xq = x_ref[:, :, pl.ds(off, _LANES)]
        if mask:
            # Zero out-of-range spatial positions (only the tail chunk has any).
            xq = jnp.where(base + off + lane < s_total, xq, 0)
        acc_ref[...] += xq.astype(jnp.float32)
        return carry

    lax.fori_loop(0, n_groups, _add_group, 0)

    @pl.when(k == pl.num_programs(2) - 1)
    def _finalize():
        total = jnp.sum(acc_ref[...], axis=-1)
        o_ref[...] = (total * inv_count).astype(o_ref.dtype)


def _pool_one(x, per_buf, vmem_limit):
    n, c = x.shape[0], x.shape[1]
    s = 1
    for d in x.shape[2:]:
        s *= d
    x_flat = x.reshape(n, c, s)  # contiguous reshape: free, no HBM copy
    itemsize = jnp.dtype(x.dtype).itemsize
    inv_count = float(1.0 / s)

    # ---- Tile selection (no padding / transposing; cdiv grids + in-kernel
    # tail masking + dropped OOB writes handle ragged edges). ----

    # N rows per block: >= 8 for dense sublane output stores, grown to fill the
    # VMEM budget when the per-sample (C, S) slab is small.
    slab = max(c * s * itemsize, 1)
    if n <= 8:
        n_tile = n
    else:
        n_tile = min(n, max(8, (per_buf // slab) // 8 * 8))

    rows_full_s = per_buf // max(n_tile * s * itemsize, 1)
    streaming = rows_full_s < min(c, _LANES)

    # Channel tile: either the full C extent or a multiple of 128, so both the
    # input sublane rule (any dtype packing) and lane-dense output stores hold.
    if not streaming:
        c_tile = c if rows_full_s >= c else (rows_full_s // _LANES) * _LANES
    else:
        c_tile = c if c <= 2 * _LANES else 2 * _LANES

    # v7x megacore: give both TensorCores a parallel grid unit when possible.
    if _cdiv(n, n_tile) * _cdiv(c, c_tile) < 2 and c >= 2 * _LANES:
        c_tile = _round_up(_cdiv(c, 2), _LANES)
    # TODO(synk): when N and C are both tiny on v7x, split S into a leading
    # parallel axis (per-core partial sums combined by one add in JAX).

    if streaming:
        s_budget = per_buf // max(n_tile * c_tile * itemsize, 1)
        s_tile = max(_LANES, (s_budget // _LANES) * _LANES)
        s_tile = min(s_tile, _round_up(s, _LANES))
        if s_tile >= s:  # safety: whole S fits after all
            streaming = False
    if not streaming:
        s_tile = s

    cost = pl.CostEstimate(
        flops=n * c * s,
        transcendentals=0,
        bytes_accessed=n * c * s * itemsize + n * c * itemsize,
    )
    out_shape = jax.ShapeDtypeStruct((n, c), x.dtype)

    if not streaming:
        grid = (_cdiv(n, n_tile), _cdiv(c, c_tile))
        return pl.pallas_call(
            functools.partial(_gap_single_kernel, inv_count=inv_count),
            out_shape=out_shape,
            grid_spec=pltpu.PrefetchScalarGridSpec(
                num_scalar_prefetch=0,
                grid=grid,
                in_specs=[pl.BlockSpec((n_tile, c_tile, s),
                                       lambda i, j: (i, j, 0))],
                out_specs=pl.BlockSpec((n_tile, c_tile), lambda i, j: (i, j)),
            ),
            compiler_params=pltpu.CompilerParams(
                dimension_semantics=("parallel", "parallel"),
                vmem_limit_bytes=vmem_limit),
            cost_estimate=cost,
        )(x_flat)

    grid = (_cdiv(n, n_tile), _cdiv(c, c_tile), _cdiv(s, s_tile))
    kernel = functools.partial(
        _gap_stream_kernel, s_total=s, s_tile=s_tile, inv_count=inv_count,
        mask=(s % s_tile) != 0)
    return pl.pallas_call(
        kernel,
        out_shape=out_shape,
        grid_spec=pltpu.PrefetchScalarGridSpec(
            num_scalar_prefetch=0,
            grid=grid,
            in_specs=[pl.BlockSpec((n_tile, c_tile, s_tile),
                                   lambda i, j, k: (i, j, k))],
            out_specs=pl.BlockSpec((n_tile, c_tile), lambda i, j, k: (i, j)),
            scratch_shapes=[pltpu.VMEM((n_tile, c_tile, _LANES), jnp.float32)],
        ),
        compiler_params=pltpu.CompilerParams(
            dimension_semantics=("parallel", "parallel", "arbitrary"),
            vmem_limit_bytes=vmem_limit),
        cost_estimate=cost,
    )(x_flat)


def global_average_pooling(x, *, block_budget_bytes=None):
    """Global average pooling over all trailing spatial dims.

    Accepts (N, C, L), (N, C, H, W) or (N, C, D, H, W) and returns (N, C).
    Also accepts a tuple/list of such arrays (like the PyTorch module) and
    returns a tuple of (N, C) arrays.
    """
    if isinstance(x, (tuple, list)):
        return tuple(
            global_average_pooling(xi, block_budget_bytes=block_budget_bytes)
            for xi in x)

    assert x.ndim in (3, 4, 5), (
        f"expected dim in {{1,2,3}} conv input, got ndim={x.ndim}")

    vmem_cap = _vmem_capacity_bytes()
    if block_budget_bytes is None:
        # ~12.8 MiB/buffer on v7x (64 MiB VMEM), 16 MiB/buffer on v5e/v6e.
        per_buf = min(16 * 1024 * 1024, vmem_cap // 5)
    else:
        per_buf = int(block_budget_bytes)
    # Double-buffered inputs + accumulator/output headroom, well under physical.
    vmem_limit = int(min(vmem_cap * 3 // 4, 2 * per_buf + (6 << 20)))

    return _pool_one(x, per_buf, vmem_limit)


if __name__ == "__main__":
    key = jax.random.PRNGKey(0)
    k1, k2, k3, k4 = jax.random.split(key, 4)

    # 1) NCHW input consistent with AdaptiveAvgPool2d((1, 1)): (2, 4, 16, 16).
    x = jax.random.normal(k1, (2, 4, 16, 16), dtype=jnp.float32)
    out = jax.block_until_ready(global_average_pooling(x))
    ref_x = jnp.mean(x, axis=(2, 3))
    assert out.shape == (2, 4), out.shape
    assert jnp.allclose(out, ref_x, atol=1e-5, rtol=1e-5), "mismatch (x)"

    # 2) Wide-channel input + tuple handling, matching the module's forward.
    y = jax.random.normal(k2, (2, 128, 7, 7), dtype=jnp.float32)
    out_t = jax.block_until_ready(global_average_pooling((x, y)))
    ref_y = jnp.mean(y, axis=(2, 3))
    assert out_t[0].shape == (2, 4) and out_t[1].shape == (2, 128)
    assert jnp.allclose(out_t[0], ref_x, atol=1e-5, rtol=1e-5), "mismatch (tuple x)"
    assert jnp.allclose(out_t[1], ref_y, atol=1e-5, rtol=1e-5), "mismatch (tuple y)"

    # 3) Force the streaming (multi-chunk, masked-tail) path with a tiny block
    #    budget so it is exercised even at small test shapes.
    z = jax.random.normal(k3, (2, 8, 40, 40), dtype=jnp.float32)
    out_z = jax.block_until_ready(
        global_average_pooling(z, block_budget_bytes=64 * 1024))
    ref_z = jnp.mean(z, axis=(2, 3))
    assert out_z.shape == (2, 8)
    assert jnp.allclose(out_z, ref_z, atol=1e-5, rtol=1e-5), "mismatch (streaming z)"

    # 4) bf16 input (f32 accumulation inside the kernel).
    w = jax.random.normal(k4, (2, 128, 7, 7), dtype=jnp.bfloat16)
    out_w = jax.block_until_ready(global_average_pooling(w))
    ref_w = jnp.mean(w.astype(jnp.float32), axis=(2, 3))
    assert out_w.dtype == jnp.bfloat16 and out_w.shape == (2, 128)
    assert jnp.allclose(out_w.astype(jnp.float32), ref_w, atol=2e-2, rtol=2e-2), \
        "mismatch (bf16 w)"

    print("KERNEL_OK")
</pallas_src>

<mosaic_0001>
module attributes {stable_mosaic.version = 11 : i64} {
  func.func @_gap_single_kernel(%arg0: i32, %arg1: i32, %arg2: memref<2x4x256xf32, #tpu.memory_space<vmem>>, %arg3: memref<2x4xf32, #tpu.memory_space<vmem>>) attributes {dimension_semantics = [#tpu.dimension_semantics<parallel>, #tpu.dimension_semantics<parallel>], iteration_bounds = array<i64: 1, 1>, scalar_prefetch = 0 : i64, scratch_operands = 0 : i64, tpu.core_type = #tpu.core_type<tc>, window_params = [{transform_indices = @transform_0, window_bounds = array<i64: 2, 4, 256>}, {transform_indices = @transform_1, window_bounds = array<i64: 2, 4>}]} {
    %c0 = arith.constant 0 : index
    %c0_0 = arith.constant 0 : index
    %c0_1 = arith.constant 0 : index
    %0 = vector.load %arg2[%c0, %c0_0, %c0_1] : memref<2x4x256xf32, #tpu.memory_space<vmem>>, vector<2x4x256xf32>
    %cst = arith.constant dense<0.000000e+00> : vector<2x4xf32>
    %1 = vector.multi_reduction <add>, %0, %cst [2] : vector<2x4x256xf32> to vector<2x4xf32>
    %cst_2 = arith.constant 3.906250e-03 : f32
    %2 = vector.broadcast %cst_2 : f32 to vector<2x4xf32>
    %3 = arith.mulf %1, %2 : vector<2x4xf32>
    %c0_3 = arith.constant 0 : index
    %c0_4 = arith.constant 0 : index
    %4 = vector.load %arg3[%c0_3, %c0_4] : memref<2x4xf32, #tpu.memory_space<vmem>>, vector<2x4xf32>
    tpu.vector_store %arg3[%c0_3, %c0_4], %3 {strides = array<i32>} : memref<2x4xf32, #tpu.memory_space<vmem>>, vector<2x4xf32>,
    return
  }
  func.func @transform_0(%arg0: i32, %arg1: i32) -> (i32, i32, i32) {
    %c0_i32 = arith.constant 0 : i32
    %c0_i32_0 = arith.constant 0 : i32
    return %arg0, %arg1, %c0_i32 : i32, i32, i32
  }
  func.func @transform_1(%arg0: i32, %arg1: i32) -> (i32, i32) {
    %c0_i32 = arith.constant 0 : i32
    return %arg0, %arg1 : i32, i32
  }
}

</mosaic_0001>

<llo_original>
// kernel: tpu_custom_call.1
$region0: #{tpu_custom_call.1}
  #allocation0 [shape = 'u32[]', space=smem, size = 0x4, offset = 0x4, fixed_abs, tag = 'smem constant byte address 0x4 - core index']
  #allocation1 [shape = 'u32[144,128]{1,0:T(1,128)}', space=vmem, size = 0x12000, scoped, tag = 'internal scratch']
  %s0 = inlined_call_operand.hbm [shape: f32[2,4,256], index: 0, kind: input, shape index: {}]
  %s1 = inlined_call_operand.hbm [shape: f32[2,4], index: 1, kind: output, shape index: {}]
  %s2 = sld [smem:[#allocation0]]
  $region18: #{tpu_custom_call.1} parent=0
    _
  %s4 = ssub.s32 1, %s2
  %s5 = scalar_select 0, %s4, %s2
  $region1: #{tpu_custom_call.1} parent=0
    #allocation2 [shape = 'u8[8192]{0}', space=vmem, size = 0x2000, scoped, tag = 'input window, operand 0, single buffered']
    #allocation3 [shape = 's32[1]{0}', space=sflag, size = 0x4, scoped, tag = 'scoped memory for tpu_custom_call.1']
    #allocation4 [shape = 's32[1]{0}', space=sflag, size = 0x4, scoped, tag = 'scoped memory for tpu_custom_call.1']
    #allocation5 [shape = 'u8[1024]{0}', space=vmem, size = 0x400, scoped, tag = 'output window, operand 0, single buffered']
    %6 = vsyncpa [#allocation3], 0
    %7 = vsyncpa [#allocation4], 0
    // Predicated region
    $region2: #{tpu_custom_call.1} parent=1 // pred_check
      _
    $region3: #{tpu_custom_call.1} parent=1 // pred_check_branch
      %9 = sbr.rel (0) target = $region5
    $region4: #{tpu_custom_call.1} parent=1 // pred_region
      %s11 = ssub.s32 256, 256
      %12 = vsyncadd [#allocation3], %s11
      %s13 = sshll.u32 [#allocation2], 4
      %s14 = int_to_ptr.vmem [resolvable:$true] %s13
      %19 = dma.hbm_to_vmem [thread:$0]  %s0, 256, %s14, [#allocation3], 128, 128, 8
    $region5: #{tpu_custom_call.1} parent=1 // pred_fallthru
      _
    // Predicated region
    $region6: #{tpu_custom_call.1} parent=1 // pred_check
      _
    $region7: #{tpu_custom_call.1} parent=1 // pred_check_branch
      %21 = sbr.rel (0) target = $region9
    $region8: #{tpu_custom_call.1} parent=1 // pred_region
      %22 = dma.done [#allocation3], 256
    $region9: #{tpu_custom_call.1} parent=1 // pred_fallthru
      _
    %v23 = vld [vmem:[#allocation2] sm:$0xff]
    %v24 = vld [vmem:[#allocation2 + $0x8] sm:$0xff]
    %v27 = vcombine.high %v23, %v23
    %v28 = vcombine.high %v24, %v24
    %vm31 = vcmask 1043456
    %v32 = vsel %vm31, %v23, 0.0
    %v33 = vsel %vm31, %v27, 0.0
    %v34 = vadd.f32 %v32, %v33
    %35 = vadd.xlane.f32.xlu0 %v34
    %v36 = vpop.xlane.xlu0 %35
    %v37 = vsel %vm31, %v24, 0.0
    %v38 = vsel %vm31, %v28, 0.0
    %v39 = vadd.f32 %v37, %v38
    %40 = vadd.xlane.f32.xlu0 %v39
    %v41 = vpop.xlane.xlu0 %40
    %v42 = vmul.f32 %v36, 0.00390625
    %v43 = vmul.f32 %v41, 0.00390625
    %v46 = vlaneseq
    %v47 = vand.u32 %v46, 127
    %v48 = vlaneseq
    %v49 = vshrl.u32 %v48, 7
    %v50 = vsub.s32 %v47, %v49
    %v51 = vrot.slane %v42, %v50
    %v52 = vlaneseq
    %v53 = vshrl.u32 %v52, 7
    %v54 = vsub.s32 %v47, %v53
    %v55 = vrot.slane %v43, %v54
    %vm56 = vcmask 1041409
    %v57 = vsel %vm56, %v55, %v51
    %vm59 = vcmask 25600
    %60 = vst.msk [vmem:[#allocation5] sm:$0x3] %vm59, %v57
    // Predicated region
    $region10: #{tpu_custom_call.1} parent=1 // pred_check
      _
    $region11: #{tpu_custom_call.1} parent=1 // pred_check_branch
      %62 = sbr.rel (0) target = $region13
    $region12: #{tpu_custom_call.1} parent=1 // pred_region
      %s64 = ssub.s32 32, 32
      %65 = vsyncadd [#allocation4], %s64
      %s67 = sshll.u32 [#allocation5], 4
      %s68 = int_to_ptr.vmem [resolvable:$true] %s67
      %70 = dma.vmem_to_hbm [thread:$0]  %s68, 32, %s1, [#allocation4]
    $region13: #{tpu_custom_call.1} parent=1 // pred_fallthru
      _
    // Predicated region
    $region14: #{tpu_custom_call.1} parent=1 // pred_check
      _
    $region15: #{tpu_custom_call.1} parent=1 // pred_check_branch
      %72 = sbr.rel (0) target = $region17
    $region16: #{tpu_custom_call.1} parent=1 // pred_region
      %73 = dma.done [#allocation4], 32
    $region17: #{tpu_custom_call.1} parent=1 // pred_fallthru
      _
    %74 = vsyncpa [#allocation3], 1
    %75 = vsyncpa [#allocation4], 1

</llo_original>
